<compile_context>
chip_gen: v6e
topology: v6e:2x2x1
jax: 0.10.0
libtpu: 0.0.40
codegen_flags: <defaults>
</compile_context>

<pallas_src>
import math
import functools

import jax
import jax.numpy as jnp
from jax.experimental import pallas as pl
from jax.experimental.pallas import tpu as pltpu


def make_sinusoidal_pe(d_model: int, max_len: int = 128) -> jnp.ndarray:
    """Deterministic parameter-free buffer, identical to the torch __init__."""
    position = jnp.arange(0, max_len, dtype=jnp.float32)[:, None]            # (L, 1)
    div_term = jnp.exp(jnp.arange(0, d_model, 2, dtype=jnp.float32)
                       * (-math.log(10000.0) / d_model))                     # (D/2,)
    pe = jnp.zeros((max_len, d_model), dtype=jnp.float32)
    pe = pe.at[:, 0::2].set(jnp.sin(position * div_term))
    pe = pe.at[:, 1::2].set(jnp.cos(position * div_term))
    return pe                                                                # (L, D)


def _pe_add_kernel(x_ref, pe_ref, o_ref):
    # x_ref: (TR, TC); pe_ref: (1, TC) broadcasts over the row (batch) dim.
    o_ref[...] = x_ref[...] + pe_ref[...]


def _pe_add_dropout_kernel(x_ref, pe_ref, u_ref, o_ref, *, p):
    # Inverted dropout: keep with prob (1 - p), scale kept values by 1/(1-p).
    y = x_ref[...] + pe_ref[...]
    keep = u_ref[...] >= jnp.float32(p)
    scale = jnp.asarray(1.0 / (1.0 - p), y.dtype)
    o_ref[...] = jnp.where(keep, y * scale, jnp.asarray(0.0, y.dtype))


def _pick_tile(dim: int, unit: int, cap: int) -> int:
    """Largest legal tile <= cap: full extent if it fits, else a multiple of `unit`."""
    if dim <= cap:
        return dim
    return max((cap // unit) * unit, unit)


def positional_encoding(x, pe, *, p=0.2, training=False, rng_key=None):
    """x: (B, S, D); pe: (max_len, D) buffer.  Matches PositionalEncoding.forward."""
    B, S, D = x.shape
    N = S * D

    # Lane-dense, zero-copy reshapes (row-major contiguity preserved).
    x2 = x.reshape(B, N)
    pe2 = pe[:S].astype(x.dtype).reshape(1, N)   # broadcast row, pre-cast to x.dtype

    # Tile sizing: <= 512 x 1024 f32 (~2 MiB/buffer) keeps 3-4 arrays x 2 pipeline
    # buffers well inside the scoped VMEM of v5e (16 MiB) / v6e (32) / v7x (32).
    tr = _pick_tile(B, 8, 512)
    tc = _pick_tile(N, 128, 1024)
    grid = (pl.cdiv(B, tr), pl.cdiv(N, tc))

    x_spec = pl.BlockSpec((tr, tc), lambda i, j: (i, j))
    pe_spec = pl.BlockSpec((1, tc), lambda i, j: (0, j))
    out_spec = pl.BlockSpec((tr, tc), lambda i, j: (i, j))

    itemsize = jnp.dtype(x.dtype).itemsize
    flops = B * N
    bytes_accessed = (2 * B * N + N) * itemsize   # x read + out write + pe read

    use_dropout = bool(training) and float(p) > 0.0
    if use_dropout:
        if rng_key is None:
            rng_key = jax.random.PRNGKey(0)
        # Host-generated uniform mask (bitstream differs from torch's RNG; the
        # Bernoulli-keep / rescale semantics of nn.Dropout are preserved).
        u = jax.random.uniform(rng_key, (B, N), dtype=jnp.float32)
        kernel = functools.partial(_pe_add_dropout_kernel, p=float(p))
        in_specs = [x_spec, pe_spec, pl.BlockSpec((tr, tc), lambda i, j: (i, j))]
        args = (x2, pe2, u)
        flops += 2 * B * N
        bytes_accessed += B * N * 4
    else:
        kernel = _pe_add_kernel
        in_specs = [x_spec, pe_spec]
        args = (x2, pe2)

    out2 = pl.pallas_call(
        kernel,
        out_shape=jax.ShapeDtypeStruct((B, N), x.dtype),
        grid=grid,
        in_specs=in_specs,
        out_specs=out_spec,
        compiler_params=pltpu.CompilerParams(
            dimension_semantics=("parallel", "parallel")),
        cost_estimate=pl.CostEstimate(
            flops=flops, transcendentals=0, bytes_accessed=bytes_accessed),
    )(*args)
    return out2.reshape(B, S, D)


if __name__ == "__main__":
    key = jax.random.PRNGKey(0)
    B, S, D, MAX_LEN = 2, 8, 32, 128
    P = 0.2

    x = jax.random.normal(key, (B, S, D), dtype=jnp.float32)
    pe = make_sinusoidal_pe(D, MAX_LEN)

    # Eval-mode forward (dropout is identity) — exact semantics check.
    out = jax.block_until_ready(positional_encoding(x, pe, p=P, training=False))
    ref = x + pe[:S][None]
    assert out.shape == (B, S, D) and out.dtype == jnp.float32
    assert jnp.allclose(out, ref, atol=1e-6, rtol=1e-6)

    # Training-mode forward (dropout active) — exact check against the same
    # host-generated mask the wrapper uses.
    drop_key = jax.random.PRNGKey(42)
    out_tr = jax.block_until_ready(
        positional_encoding(x, pe, p=P, training=True, rng_key=drop_key))
    u = jax.random.uniform(drop_key, (B, S * D), dtype=jnp.float32).reshape(B, S, D)
    ref_tr = jnp.where(u >= P, ref * (1.0 / (1.0 - P)), 0.0)
    assert out_tr.shape == (B, S, D)
    assert jnp.allclose(out_tr, ref_tr, atol=1e-6, rtol=1e-6)

    print("KERNEL_OK")
</pallas_src>

<mosaic_0001>
module attributes {stable_mosaic.version = 11 : i64} {
  func.func @_pe_add_kernel(%arg0: i32, %arg1: i32, %arg2: memref<2x256xf32, #tpu.memory_space<vmem>>, %arg3: memref<1x256xf32, #tpu.memory_space<vmem>>, %arg4: memref<2x256xf32, #tpu.memory_space<vmem>>) attributes {dimension_semantics = [#tpu.dimension_semantics<parallel>, #tpu.dimension_semantics<parallel>], iteration_bounds = array<i64: 1, 1>, scalar_prefetch = 0 : i64, scratch_operands = 0 : i64, tpu.core_type = #tpu.core_type<tc>, window_params = [{transform_indices = @transform_0, window_bounds = array<i64: 2, 256>}, {transform_indices = @transform_1, window_bounds = array<i64: 1, 256>}, {transform_indices = @transform_2, window_bounds = array<i64: 2, 256>}]} {
    %c0 = arith.constant 0 : index
    %c0_0 = arith.constant 0 : index
    %0 = vector.load %arg2[%c0, %c0_0] : memref<2x256xf32, #tpu.memory_space<vmem>>, vector<2x256xf32>
    %c0_1 = arith.constant 0 : index
    %c0_2 = arith.constant 0 : index
    %1 = vector.load %arg3[%c0_1, %c0_2] : memref<1x256xf32, #tpu.memory_space<vmem>>, vector<1x256xf32>
    %2 = vector.broadcast %1 : vector<1x256xf32> to vector<2x256xf32>
    %3 = arith.addf %0, %2 : vector<2x256xf32>
    %c0_3 = arith.constant 0 : index
    %c0_4 = arith.constant 0 : index
    %4 = vector.load %arg4[%c0_3, %c0_4] : memref<2x256xf32, #tpu.memory_space<vmem>>, vector<2x256xf32>
    tpu.vector_store %arg4[%c0_3, %c0_4], %3 {strides = array<i32>} : memref<2x256xf32, #tpu.memory_space<vmem>>, vector<2x256xf32>,
    return
  }
  func.func @transform_0(%arg0: i32, %arg1: i32) -> (i32, i32) {
    %c0_i32 = arith.constant 0 : i32
    return %arg0, %arg1 : i32, i32
  }
  func.func @transform_1(%arg0: i32, %arg1: i32) -> (i32, i32) {
    %c0_i32 = arith.constant 0 : i32
    %c0_i32_0 = arith.constant 0 : i32
    return %c0_i32, %arg1 : i32, i32
  }
  func.func @transform_2(%arg0: i32, %arg1: i32) -> (i32, i32) {
    %c0_i32 = arith.constant 0 : i32
    return %arg0, %arg1 : i32, i32
  }
}

</mosaic_0001>

<llo_original>
// kernel: tpu_custom_call.1
$region0: #{tpu_custom_call.1}
  #allocation0 [shape = 'u32[]', space=smem, size = 0x4, offset = 0x4, fixed_abs, tag = 'smem constant byte address 0x4 - core index']
  #allocation1 [shape = 'u32[144,128]{1,0:T(1,128)}', space=vmem, size = 0x12000, scoped, tag = 'internal scratch']
  %s0 = inlined_call_operand.hbm [shape: f32[2,256], index: 0, kind: input, shape index: {}]
  %s1 = inlined_call_operand.hbm [shape: f32[1,256], index: 1, kind: input, shape index: {}]
  %s2 = inlined_call_operand.hbm [shape: f32[2,256], index: 2, kind: output, shape index: {}]
  %s3 = sld [smem:[#allocation0]]
  $region26: #{tpu_custom_call.1} parent=0
    _
  %s5 = ssub.s32 1, %s3
  %s6 = scalar_select 0, %s5, %s3
  $region1: #{tpu_custom_call.1} parent=0
    #allocation2 [shape = 'u8[2048]{0}', space=vmem, size = 0x800, scoped, tag = 'input window, operand 0, single buffered']
    #allocation3 [shape = 's32[1]{0}', space=sflag, size = 0x4, scoped, tag = 'scoped memory for tpu_custom_call.1']
    #allocation4 [shape = 's32[1]{0}', space=sflag, size = 0x4, scoped, tag = 'scoped memory for tpu_custom_call.1']
    #allocation5 [shape = 'u8[1024]{0}', space=vmem, size = 0x400, scoped, tag = 'input window, operand 1, single buffered']
    #allocation6 [shape = 's32[1]{0}', space=sflag, size = 0x4, scoped, tag = 'scoped memory for tpu_custom_call.1']
    #allocation7 [shape = 'u8[2048]{0}', space=vmem, size = 0x800, scoped, tag = 'output window, operand 0, single buffered']
    %7 = vsyncpa [#allocation3], 0
    %8 = vsyncpa [#allocation6], 0
    %9 = vsyncpa [#allocation4], 0
    // Predicated region
    $region2: #{tpu_custom_call.1} parent=1 // pred_check
      _
    $region3: #{tpu_custom_call.1} parent=1 // pred_check_branch
      %11 = sbr.rel (0) target = $region5
    $region4: #{tpu_custom_call.1} parent=1 // pred_region
      %s13 = ssub.s32 64, 64
      %14 = vsyncadd [#allocation3], %s13
      %s16 = sshll.u32 [#allocation2], 4
      %s17 = int_to_ptr.vmem [resolvable:$true] %s16
      %19 = dma.hbm_to_vmem [thread:$0]  %s0, 64, %s17, [#allocation3]
    $region5: #{tpu_custom_call.1} parent=1 // pred_fallthru
      _
    // Predicated region
    $region6: #{tpu_custom_call.1} parent=1 // pred_check
      _
    $region7: #{tpu_custom_call.1} parent=1 // pred_check_branch
      %21 = sbr.rel (0) target = $region9
    $region8: #{tpu_custom_call.1} parent=1 // pred_region
      %s23 = ssub.s32 32, 32
      %24 = vsyncadd [#allocation6], %s23
      %s26 = sshll.u32 [#allocation5], 4
      %s27 = int_to_ptr.vmem [resolvable:$true] %s26
      %29 = dma.hbm_to_vmem [thread:$0]  %s1, 32, %s27, [#allocation6]
    $region9: #{tpu_custom_call.1} parent=1 // pred_fallthru
      _
    // Predicated region
    $region10: #{tpu_custom_call.1} parent=1 // pred_check
      _
    $region11: #{tpu_custom_call.1} parent=1 // pred_check_branch
      %31 = sbr.rel (0) target = $region13
    $region12: #{tpu_custom_call.1} parent=1 // pred_region
      %32 = dma.done [#allocation3], 64
    $region13: #{tpu_custom_call.1} parent=1 // pred_fallthru
      _
    // Predicated region
    $region14: #{tpu_custom_call.1} parent=1 // pred_check
      _
    $region15: #{tpu_custom_call.1} parent=1 // pred_check_branch
      %34 = sbr.rel (0) target = $region17
    $region16: #{tpu_custom_call.1} parent=1 // pred_region
      %35 = dma.done [#allocation6], 32
    $region17: #{tpu_custom_call.1} parent=1 // pred_fallthru
      _
    %v36 = vld [vmem:[#allocation2] sm:$0xf]
    %v37 = vld [vmem:[#allocation5] sm:$0x3]
    %v39 = vlaneseq
    %v40 = vshrl.u32 %v39, 7
    %v41 = vsub.s32 0, %v40
    %v42 = vrot.slane %v37, %v41
    %v43 = vlaneseq
    %v44 = vshrl.u32 %v43, 7
    %v45 = vsub.s32 1, %v44
    %v46 = vrot.slane %v37, %v45
    %v47 = vcombine.low %v42, %v46
    %v49 = vunpack.c.l.s4 1983009808
    %v50 = vunpack.c.0.s8 %v49
    %v51 = vlaneseq
    %v52 = vshrl.u32 %v51, 7
    %v53 = vsub.s32 %v50, %v52
    %v54 = vrot.slane %v47, %v53
    %v56 = vadd.f32 %v36, %v54
    %57 = vst [vmem:[#allocation7] sm:$0xf] %v56
    // Predicated region
    $region18: #{tpu_custom_call.1} parent=1 // pred_check
      _
    $region19: #{tpu_custom_call.1} parent=1 // pred_check_branch
      %59 = sbr.rel (0) target = $region21
    $region20: #{tpu_custom_call.1} parent=1 // pred_region
      %s61 = ssub.s32 64, 64
      %62 = vsyncadd [#allocation4], %s61
      %s64 = sshll.u32 [#allocation7], 4
      %s65 = int_to_ptr.vmem [resolvable:$true] %s64
      %67 = dma.vmem_to_hbm [thread:$0]  %s65, 64, %s2, [#allocation4]
    $region21: #{tpu_custom_call.1} parent=1 // pred_fallthru
      _
    // Predicated region
    $region22: #{tpu_custom_call.1} parent=1 // pred_check
      _
    $region23: #{tpu_custom_call.1} parent=1 // pred_check_branch
      %69 = sbr.rel (0) target = $region25
    $region24: #{tpu_custom_call.1} parent=1 // pred_region
      %70 = dma.done [#allocation4], 64
    $region25: #{tpu_custom_call.1} parent=1 // pred_fallthru
      _
    %71 = vsyncpa [#allocation3], 1
    %72 = vsyncpa [#allocation6], 1
    %73 = vsyncpa [#allocation4], 1

</llo_original>
